<compile_context>
chip_gen: v6e
topology: v6e:2x2x1
jax: 0.10.0
libtpu: 0.0.40
codegen_flags: <defaults>
</compile_context>

<pallas_src>
import functools

import jax
import jax.numpy as jnp
import numpy as np
from jax import lax
from jax.experimental import pallas as pl
from jax.experimental.pallas import tpu as pltpu


def _round_up(x, m):
    return ((x + m - 1) // m) * m


def _hyperedge_kernel(t_ref, a_ref, v_ref, p_ref, adj_ref, *, batch, k2, v_pad):
    B = batch
    D = t_ref.shape[1]
    f32 = jnp.float32

    t = t_ref[...].astype(f32)
    a = a_ref[...].astype(f32)
    v = v_ref[...].astype(f32)
    p = p_ref[...].astype(f32)

    # hyperedges_list = B^-1 H^T nodes_list  ==  mean of the 4 modality nodes per sample.
    he = (t + a + v + p) * 0.25                                        # [B, D]

    # ---- Pairwise L1 distances: one fused VPU pass + one MXU block-sum reduce --------
    #   x_rep[c, i*D + d] = he[c, d]   (lane-tile of he)
    #   y_rep[c, i*D + d] = he[i, d]   (row-major "flatten" of he, sublane-broadcast)
    #   dist[c, i] = sum_d |he[c,d] - he[i,d]| = (|x_rep - y_rep| @ block_sum)[c, i]
    x_rep = jnp.concatenate([he] * B, axis=1)                          # [B, B*D]
    y_row = jnp.concatenate([he[i:i + 1, :] for i in range(B)], axis=1)  # [1, B*D] (cheap static slices)
    y_rep = jnp.broadcast_to(y_row, (B, B * D))                        # [B, B*D]
    absdiff = jnp.abs(x_rep - y_rep)                                   # [B, B*D]

    r_ids = lax.broadcasted_iota(jnp.int32, (B * D, B), 0)
    b_ids = lax.broadcasted_iota(jnp.int32, (B * D, B), 1)
    block_sum = ((r_ids >= b_ids * D) & (r_ids < (b_ids + 1) * D)).astype(f32)  # [B*D, B]
    dist = jnp.dot(absdiff, block_sum, preferred_element_type=f32)     # [B, B], symmetric

    # ---- Top-k_2 membership, built directly transposed: mt[c, i] == member[i, c] ------
    # mt[c, i] = (c == i) or (c is among the k2 rows with largest dist[:, i]);
    # tie-break toward the lower index (== stable descending sort of the reference).
    row_ids = lax.broadcasted_iota(jnp.int32, (B, B), 0)
    col_ids = lax.broadcasted_iota(jnp.int32, (B, B), 1)
    eye = row_ids == col_ids
    eye_f = eye.astype(f32)

    mt = eye
    work = dist
    for _ in range(k2):                                                # k2 static & small
        mx = jnp.max(work, axis=0, keepdims=True)                      # [1, B] per-column max
        hit = work == mx
        first = jnp.min(jnp.where(hit, row_ids, B), axis=0, keepdims=True)
        sel = row_ids == first                                         # column-wise one-hot
        mt = jnp.logical_or(mt, sel)
        work = jnp.where(sel, -jnp.inf, work)
    mt_f = mt.astype(f32)                                              # [B, B]

    # ---- adjacency via the block structure of H_bin = [stack4(I) | stack4(mt)] --------
    #   adjacency = diag(1/Dv) H_bin diag(1/De) H_bin^T = tile_4x4(core)
    #   core = (I/4 + mt diag(1/De_right) mt^T) / Dv_core
    de_right = 4.0 * jnp.sum(mt_f, axis=0, keepdims=True)              # [1, B]  (>= 4)
    dv_core = 1.0 + jnp.sum(mt_f, axis=1, keepdims=True)               # [B, 1]  (>= 2)
    mt_scaled = mt_f / de_right
    core_right = lax.dot_general(                                      # mt_scaled @ mt^T
        mt_scaled, mt_f,
        dimension_numbers=(((1,), (1,)), ((), ())),
        preferred_element_type=f32)                                    # [B, B]
    core = (0.25 * eye_f + core_right) / dv_core                       # [B, B]

    # ---- Lane-dense tiled write: adj_padded[v, w] = core[v % B, w % B] ----------------
    reps, rem = divmod(v_pad, B)
    pieces = [core] * reps + ([core[:, :rem]] if rem else [])
    row_block = pieces[0] if len(pieces) == 1 else jnp.concatenate(pieces, axis=1)  # [B, v_pad]
    row_block = row_block.astype(adj_ref.dtype)
    for bi in range(4):                                                # full-width, aligned stores
        adj_ref[bi * B:(bi + 1) * B, :] = row_block


def hyperedge_construction(nodes_t, nodes_a, nodes_v, nodes_p, k_2):
    B, D = nodes_t.shape
    V = 4 * B
    k2 = min(int(k_2), B)                                              # self.k_2 = k if k < k_2
    v_pad = _round_up(V, 128)                                          # lane-dense output slab

    kernel = functools.partial(_hyperedge_kernel, batch=B, k2=k2, v_pad=v_pad)
    vmem = lambda: pl.BlockSpec(memory_space=pltpu.MemorySpace.VMEM)

    # TODO(synk): for large batch sizes, tile the (V, V) adjacency over a 2D grid
    # (dimension_semantics=("parallel","parallel") for v7x megacore) and raise
    # vmem_limit_bytes via pltpu.CompilerParams; at B=8 a single block is optimal.
    adj_padded = pl.pallas_call(
        kernel,
        out_shape=jax.ShapeDtypeStruct((V, v_pad), jnp.float32),
        in_specs=[vmem(), vmem(), vmem(), vmem()],
        out_specs=vmem(),
    )(nodes_t, nodes_a, nodes_v, nodes_p)

    adjacency = adj_padded[:, :V]
    # nodes_list = torch.cat([t, a, v, p], 0): pure pass-through, handled by XLA outside
    # the kernel (avoids masked sub-128-lane stores + an extra output DMA in the kernel).
    nodes_list = jnp.concatenate([nodes_t, nodes_a, nodes_v, nodes_p], axis=0).astype(jnp.float32)
    return adjacency, nodes_list


def _reference(t, a, v, p, k_2):
    """Pure numpy re-implementation of the PyTorch forward (dense adjacency)."""
    t, a, v, p = (np.asarray(x, np.float64) for x in (t, a, v, p))
    B = t.shape[0]
    V = 4 * B
    nodes = np.concatenate([t, a, v, p], 0)
    H = np.zeros((V, B), np.float64)
    for i in range(B):
        H[i, i] = H[i + B, i] = H[i + 2 * B, i] = H[i + 3 * B, i] = 1.0
    B_inv = np.diag(1.0 / H.sum(0))
    he = B_inv @ H.T @ nodes
    dist = np.abs(he[:, None, :] - he[None, :, :]).sum(-1)
    k2 = min(int(k_2), dist.shape[0])
    idx_max = np.argsort(-dist, axis=1, kind="stable")[:, :k2]
    new_cols = []
    for i in range(B):
        h_new = H[:, i].copy()
        for j in range(k2):
            h_new = h_new + H[:, idx_max[i, j]]
        new_cols.append(h_new)          # hash-dedup always appends (columns differ from seeds)
    H_full = np.concatenate([H, np.stack(new_cols, 1)], 1)
    H_bin = (H_full != 0).astype(np.float64)        # COO data = ones -> binarised
    De = H_bin.sum(0)
    Dv = H_bin.sum(1)
    DH = H_bin / Dv[:, None]
    BH_T = (H_bin / De[None, :]).T
    return DH @ BH_T, nodes


if __name__ == "__main__":
    B, D, K2 = 8, 32, 3                                                # batch=8, dim_capsule=32, args.k_2=3
    key = jax.random.PRNGKey(0)
    kt, ka, kv, kp = jax.random.split(key, 4)
    nodes_t = jax.random.normal(kt, (B, D), jnp.float32)
    nodes_a = jax.random.normal(ka, (B, D), jnp.float32)
    nodes_v = jax.random.normal(kv, (B, D), jnp.float32)
    nodes_p = jax.random.normal(kp, (B, D), jnp.float32)

    adjacency, nodes_list = hyperedge_construction(nodes_t, nodes_a, nodes_v, nodes_p, K2)
    jax.block_until_ready((adjacency, nodes_list))

    ref_adj, ref_nodes = _reference(nodes_t, nodes_a, nodes_v, nodes_p, K2)
    np.testing.assert_allclose(np.asarray(adjacency), ref_adj, rtol=1e-5, atol=1e-5)
    np.testing.assert_allclose(np.asarray(nodes_list), ref_nodes, rtol=1e-6, atol=1e-6)

    print("KERNEL_OK")
</pallas_src>

<mosaic_0001>
module attributes {stable_mosaic.version = 11 : i64} {
  func.func @_hyperedge_kernel(%arg0: memref<8x32xf32, #tpu.memory_space<vmem>>, %arg1: memref<8x32xf32, #tpu.memory_space<vmem>>, %arg2: memref<8x32xf32, #tpu.memory_space<vmem>>, %arg3: memref<8x32xf32, #tpu.memory_space<vmem>>, %arg4: memref<32x128xf32, #tpu.memory_space<vmem>>) attributes {dimension_semantics = [], scalar_prefetch = 0 : i64, scratch_operands = 0 : i64, tpu.core_type = #tpu.core_type<tc>} {
    %c0 = arith.constant 0 : index
    %c0_0 = arith.constant 0 : index
    %0 = vector.load %arg0[%c0, %c0_0] : memref<8x32xf32, #tpu.memory_space<vmem>>, vector<8x32xf32>
    %c0_1 = arith.constant 0 : index
    %c0_2 = arith.constant 0 : index
    %1 = vector.load %arg1[%c0_1, %c0_2] : memref<8x32xf32, #tpu.memory_space<vmem>>, vector<8x32xf32>
    %c0_3 = arith.constant 0 : index
    %c0_4 = arith.constant 0 : index
    %2 = vector.load %arg2[%c0_3, %c0_4] : memref<8x32xf32, #tpu.memory_space<vmem>>, vector<8x32xf32>
    %c0_5 = arith.constant 0 : index
    %c0_6 = arith.constant 0 : index
    %3 = vector.load %arg3[%c0_5, %c0_6] : memref<8x32xf32, #tpu.memory_space<vmem>>, vector<8x32xf32>
    %4 = arith.addf %0, %1 : vector<8x32xf32>
    %5 = arith.addf %4, %2 : vector<8x32xf32>
    %6 = arith.addf %5, %3 : vector<8x32xf32>
    %cst = arith.constant 2.500000e-01 : f32
    %7 = vector.broadcast %cst : f32 to vector<8x32xf32>
    %8 = arith.mulf %6, %7 : vector<8x32xf32>
    %9 = tpu.concatenate %8, %8, %8, %8, %8, %8, %8, %8 in 1 : vector<8x32xf32>, vector<8x32xf32>, vector<8x32xf32>, vector<8x32xf32>, vector<8x32xf32>, vector<8x32xf32>, vector<8x32xf32>, vector<8x32xf32> -> vector<8x256xf32>
    %10 = vector.extract_strided_slice %8 {offsets = [0, 0], sizes = [1, 32], strides = [1, 1]} : vector<8x32xf32> to vector<1x32xf32>
    %11 = vector.extract_strided_slice %8 {offsets = [1, 0], sizes = [1, 32], strides = [1, 1]} : vector<8x32xf32> to vector<1x32xf32>
    %12 = vector.extract_strided_slice %8 {offsets = [2, 0], sizes = [1, 32], strides = [1, 1]} : vector<8x32xf32> to vector<1x32xf32>
    %13 = vector.extract_strided_slice %8 {offsets = [3, 0], sizes = [1, 32], strides = [1, 1]} : vector<8x32xf32> to vector<1x32xf32>
    %14 = vector.extract_strided_slice %8 {offsets = [4, 0], sizes = [1, 32], strides = [1, 1]} : vector<8x32xf32> to vector<1x32xf32>
    %15 = vector.extract_strided_slice %8 {offsets = [5, 0], sizes = [1, 32], strides = [1, 1]} : vector<8x32xf32> to vector<1x32xf32>
    %16 = vector.extract_strided_slice %8 {offsets = [6, 0], sizes = [1, 32], strides = [1, 1]} : vector<8x32xf32> to vector<1x32xf32>
    %17 = vector.extract_strided_slice %8 {offsets = [7, 0], sizes = [1, 32], strides = [1, 1]} : vector<8x32xf32> to vector<1x32xf32>
    %18 = tpu.concatenate %10, %11, %12, %13, %14, %15, %16, %17 in 1 : vector<1x32xf32>, vector<1x32xf32>, vector<1x32xf32>, vector<1x32xf32>, vector<1x32xf32>, vector<1x32xf32>, vector<1x32xf32>, vector<1x32xf32> -> vector<1x256xf32>
    %19 = vector.shape_cast %18 : vector<1x256xf32> to vector<1x256xf32>
    %20 = vector.broadcast %19 : vector<1x256xf32> to vector<8x256xf32>
    %21 = arith.subf %9, %20 : vector<8x256xf32>
    %22 = math.absf %21 : vector<8x256xf32>
    %23 = tpu.iota {dimensions = array<i32: 0>} : vector<256x8xi32>
    %24 = tpu.iota {dimensions = array<i32: 1>} : vector<256x8xi32>
    %c32_i32 = arith.constant 32 : i32
    %25 = vector.broadcast %c32_i32 : i32 to vector<256x8xi32>
    %26 = arith.muli %24, %25 : vector<256x8xi32>
    %27 = arith.cmpi sge, %23, %26 : vector<256x8xi32>
    %c1_i32 = arith.constant 1 : i32
    %28 = vector.broadcast %c1_i32 : i32 to vector<256x8xi32>
    %29 = arith.addi %24, %28 : vector<256x8xi32>
    %c32_i32_7 = arith.constant 32 : i32
    %30 = vector.broadcast %c32_i32_7 : i32 to vector<256x8xi32>
    %31 = arith.muli %29, %30 : vector<256x8xi32>
    %32 = arith.cmpi slt, %23, %31 : vector<256x8xi32>
    %33 = arith.andi %27, %32 : vector<256x8xi1>
    %34 = arith.extui %33 : vector<256x8xi1> to vector<256x8xi32>
    %35 = arith.sitofp %34 : vector<256x8xi32> to vector<256x8xf32>
    %cst_8 = arith.constant dense<0.000000e+00> : vector<8x8xf32>
    %36 = tpu.matmul %22, %35, %cst_8 {dimension_numbers = #tpu.dot_dimension_numbers<[1], [0], [0], [1], [0, 0, 1, 1], [], []>} : vector<8x256xf32>, vector<256x8xf32>, vector<8x8xf32> -> vector<8x8xf32>
    %37 = tpu.iota {dimensions = array<i32: 0>} : vector<8x8xi32>
    %38 = tpu.iota {dimensions = array<i32: 1>} : vector<8x8xi32>
    %39 = arith.cmpi eq, %37, %38 : vector<8x8xi32>
    %40 = arith.extui %39 : vector<8x8xi1> to vector<8x8xi32>
    %41 = arith.sitofp %40 : vector<8x8xi32> to vector<8x8xf32>
    %cst_9 = arith.constant dense<0xFF800000> : vector<8xf32>
    %42 = vector.multi_reduction <maximumf>, %36, %cst_9 [0] : vector<8x8xf32> to vector<8xf32>
    %43 = vector.shape_cast %42 : vector<8xf32> to vector<1x8xf32>
    %44 = vector.broadcast %43 : vector<1x8xf32> to vector<8x8xf32>
    %45 = arith.cmpf oeq, %36, %44 : vector<8x8xf32>
    %c8_i32 = arith.constant 8 : i32
    %46 = vector.broadcast %c8_i32 : i32 to vector<8x8xi32>
    %47 = arith.select %45, %37, %46 : vector<8x8xi1>, vector<8x8xi32>
    %cst_10 = arith.constant dense<2147483647> : vector<8xi32>
    %48 = vector.multi_reduction <minsi>, %47, %cst_10 [0] : vector<8x8xi32> to vector<8xi32>
    %49 = vector.shape_cast %48 : vector<8xi32> to vector<1x8xi32>
    %50 = vector.broadcast %49 : vector<1x8xi32> to vector<8x8xi32>
    %51 = arith.cmpi eq, %37, %50 : vector<8x8xi32>
    %52 = arith.ori %39, %51 : vector<8x8xi1>
    %cst_11 = arith.constant 0xFF800000 : f32
    %53 = vector.broadcast %cst_11 : f32 to vector<8x8xf32>
    %54 = arith.select %51, %53, %36 : vector<8x8xi1>, vector<8x8xf32>
    %cst_12 = arith.constant dense<0xFF800000> : vector<8xf32>
    %55 = vector.multi_reduction <maximumf>, %54, %cst_12 [0] : vector<8x8xf32> to vector<8xf32>
    %56 = vector.shape_cast %55 : vector<8xf32> to vector<1x8xf32>
    %57 = vector.broadcast %56 : vector<1x8xf32> to vector<8x8xf32>
    %58 = arith.cmpf oeq, %54, %57 : vector<8x8xf32>
    %c8_i32_13 = arith.constant 8 : i32
    %59 = vector.broadcast %c8_i32_13 : i32 to vector<8x8xi32>
    %60 = arith.select %58, %37, %59 : vector<8x8xi1>, vector<8x8xi32>
    %cst_14 = arith.constant dense<2147483647> : vector<8xi32>
    %61 = vector.multi_reduction <minsi>, %60, %cst_14 [0] : vector<8x8xi32> to vector<8xi32>
    %62 = vector.shape_cast %61 : vector<8xi32> to vector<1x8xi32>
    %63 = vector.broadcast %62 : vector<1x8xi32> to vector<8x8xi32>
    %64 = arith.cmpi eq, %37, %63 : vector<8x8xi32>
    %65 = arith.ori %52, %64 : vector<8x8xi1>
    %cst_15 = arith.constant 0xFF800000 : f32
    %66 = vector.broadcast %cst_15 : f32 to vector<8x8xf32>
    %67 = arith.select %64, %66, %54 : vector<8x8xi1>, vector<8x8xf32>
    %cst_16 = arith.constant dense<0xFF800000> : vector<8xf32>
    %68 = vector.multi_reduction <maximumf>, %67, %cst_16 [0] : vector<8x8xf32> to vector<8xf32>
    %69 = vector.shape_cast %68 : vector<8xf32> to vector<1x8xf32>
    %70 = vector.broadcast %69 : vector<1x8xf32> to vector<8x8xf32>
    %71 = arith.cmpf oeq, %67, %70 : vector<8x8xf32>
    %c8_i32_17 = arith.constant 8 : i32
    %72 = vector.broadcast %c8_i32_17 : i32 to vector<8x8xi32>
    %73 = arith.select %71, %37, %72 : vector<8x8xi1>, vector<8x8xi32>
    %cst_18 = arith.constant dense<2147483647> : vector<8xi32>
    %74 = vector.multi_reduction <minsi>, %73, %cst_18 [0] : vector<8x8xi32> to vector<8xi32>
    %75 = vector.shape_cast %74 : vector<8xi32> to vector<1x8xi32>
    %76 = vector.broadcast %75 : vector<1x8xi32> to vector<8x8xi32>
    %77 = arith.cmpi eq, %37, %76 : vector<8x8xi32>
    %78 = arith.ori %65, %77 : vector<8x8xi1>
    %79 = arith.extui %78 : vector<8x8xi1> to vector<8x8xi32>
    %80 = arith.sitofp %79 : vector<8x8xi32> to vector<8x8xf32>
    %cst_19 = arith.constant dense<0.000000e+00> : vector<8xf32>
    %81 = vector.multi_reduction <add>, %80, %cst_19 [0] : vector<8x8xf32> to vector<8xf32>
    %82 = vector.shape_cast %81 : vector<8xf32> to vector<1x8xf32>
    %cst_20 = arith.constant 4.000000e+00 : f32
    %83 = vector.broadcast %cst_20 : f32 to vector<1x8xf32>
    %84 = arith.mulf %83, %82 : vector<1x8xf32>
    %cst_21 = arith.constant dense<0.000000e+00> : vector<8xf32>
    %85 = vector.multi_reduction <add>, %80, %cst_21 [1] : vector<8x8xf32> to vector<8xf32>
    %86 = vector.shape_cast %85 : vector<8xf32> to vector<8x1xf32>
    %cst_22 = arith.constant 1.000000e+00 : f32
    %87 = vector.broadcast %cst_22 : f32 to vector<8x1xf32>
    %88 = arith.addf %87, %86 : vector<8x1xf32>
    %89 = vector.broadcast %84 : vector<1x8xf32> to vector<8x8xf32>
    %90 = arith.divf %80, %89 : vector<8x8xf32>
    %cst_23 = arith.constant dense<0.000000e+00> : vector<8x8xf32>
    %91 = tpu.matmul %90, %80, %cst_23 {dimension_numbers = #tpu.dot_dimension_numbers<[1], [1], [0], [0], [0, 0, 1, 0], [], []>} : vector<8x8xf32>, vector<8x8xf32>, vector<8x8xf32> -> vector<8x8xf32>
    %cst_24 = arith.constant 2.500000e-01 : f32
    %92 = vector.broadcast %cst_24 : f32 to vector<8x8xf32>
    %93 = arith.mulf %92, %41 : vector<8x8xf32>
    %94 = arith.addf %93, %91 : vector<8x8xf32>
    %95 = vector.broadcast %88 : vector<8x1xf32> to vector<8x8xf32>
    %96 = arith.divf %94, %95 : vector<8x8xf32>
    %97 = tpu.concatenate %96, %96, %96, %96, %96, %96, %96, %96, %96, %96, %96, %96, %96, %96, %96, %96 in 1 : vector<8x8xf32>, vector<8x8xf32>, vector<8x8xf32>, vector<8x8xf32>, vector<8x8xf32>, vector<8x8xf32>, vector<8x8xf32>, vector<8x8xf32>, vector<8x8xf32>, vector<8x8xf32>, vector<8x8xf32>, vector<8x8xf32>, vector<8x8xf32>, vector<8x8xf32>, vector<8x8xf32>, vector<8x8xf32> -> vector<8x128xf32>
    %c0_25 = arith.constant 0 : index
    %c0_26 = arith.constant 0 : index
    %98 = vector.load %arg4[%c0_25, %c0_26] : memref<32x128xf32, #tpu.memory_space<vmem>>, vector<8x128xf32>
    tpu.vector_store %arg4[%c0_25, %c0_26], %97 {strides = array<i32>} : memref<32x128xf32, #tpu.memory_space<vmem>>, vector<8x128xf32>,
    %c8 = arith.constant 8 : index
    %c0_27 = arith.constant 0 : index
    %99 = vector.load %arg4[%c8, %c0_27] : memref<32x128xf32, #tpu.memory_space<vmem>>, vector<8x128xf32>
    tpu.vector_store %arg4[%c8, %c0_27], %97 {strides = array<i32>} : memref<32x128xf32, #tpu.memory_space<vmem>>, vector<8x128xf32>,
    %c16 = arith.constant 16 : index
    %c0_28 = arith.constant 0 : index
    %100 = vector.load %arg4[%c16, %c0_28] : memref<32x128xf32, #tpu.memory_space<vmem>>, vector<8x128xf32>
    tpu.vector_store %arg4[%c16, %c0_28], %97 {strides = array<i32>} : memref<32x128xf32, #tpu.memory_space<vmem>>, vector<8x128xf32>,
    %c24 = arith.constant 24 : index
    %c0_29 = arith.constant 0 : index
    %101 = vector.load %arg4[%c24, %c0_29] : memref<32x128xf32, #tpu.memory_space<vmem>>, vector<8x128xf32>
    tpu.vector_store %arg4[%c24, %c0_29], %97 {strides = array<i32>} : memref<32x128xf32, #tpu.memory_space<vmem>>, vector<8x128xf32>,
    return
  }
}

</mosaic_0001>

<llo_original>
// kernel: tpu_custom_call.1
$region0: #{tpu_custom_call.1}
  #allocation0 [shape = 'u32[]', space=smem, size = 0x4, offset = 0x4, fixed_abs, tag = 'smem constant byte address 0x4 - core index']
  #allocation1 [shape = 'u32[144,128]{1,0:T(1,128)}', space=vmem, size = 0x12000, scoped, tag = 'internal scratch']
  %s0 = inlined_call_operand.hbm [shape: f32[8,32], index: 0, kind: input, shape index: {}]
  %s1 = inlined_call_operand.hbm [shape: f32[8,32], index: 1, kind: input, shape index: {}]
  %s2 = inlined_call_operand.hbm [shape: f32[8,32], index: 2, kind: input, shape index: {}]
  %s3 = inlined_call_operand.hbm [shape: f32[8,32], index: 3, kind: input, shape index: {}]
  %s4 = inlined_call_operand.hbm [shape: f32[32,128], index: 4, kind: output, shape index: {}]
  %s5 = sld [smem:[#allocation0]]
  $region42: #{tpu_custom_call.1} parent=0
    _
  %s7 = ssub.s32 1, %s5
  %s8 = scalar_select 0, %s7, %s5
  $region1: #{tpu_custom_call.1} parent=0
    #allocation2 [shape = 'u8[4096]{0}', space=vmem, size = 0x1000, scoped, tag = 'input window, operand 0, single buffered']
    #allocation3 [shape = 's32[1]{0}', space=sflag, size = 0x4, scoped, tag = 'scoped memory for tpu_custom_call.1']
    #allocation4 [shape = 's32[1]{0}', space=sflag, size = 0x4, scoped, tag = 'scoped memory for tpu_custom_call.1']
    #allocation5 [shape = 'u8[4096]{0}', space=vmem, size = 0x1000, scoped, tag = 'input window, operand 1, single buffered']
    #allocation6 [shape = 's32[1]{0}', space=sflag, size = 0x4, scoped, tag = 'scoped memory for tpu_custom_call.1']
    #allocation7 [shape = 'u8[4096]{0}', space=vmem, size = 0x1000, scoped, tag = 'input window, operand 2, single buffered']
    #allocation8 [shape = 'u8[4096]{0}', space=vmem, size = 0x1000, scoped, tag = 'input window, operand 3, single buffered']
    #allocation9 [shape = 's32[1]{0}', space=sflag, size = 0x4, scoped, tag = 'scoped memory for tpu_custom_call.1']
    #allocation10 [shape = 'u8[16384]{0}', space=vmem, size = 0x4000, scoped, tag = 'output window, operand 0, single buffered']
    %9 = vsyncpa [#allocation3], 0
    %10 = vsyncpa [#allocation6], 0
    %11 = vsyncpa [#allocation9], 0
    %12 = vsyncpa [#allocation4], 0
    // Predicated region
    $region2: #{tpu_custom_call.1} parent=1 // pred_check
      _
    $region3: #{tpu_custom_call.1} parent=1 // pred_check_branch
      %14 = sbr.rel (0) target = $region5
    $region4: #{tpu_custom_call.1} parent=1 // pred_region
      %s16 = ssub.s32 128, 128
      %17 = vsyncadd [#allocation3], %s16
      %s19 = sshll.u32 [#allocation2], 4
      %s20 = int_to_ptr.vmem [resolvable:$true] %s19
      %22 = dma.hbm_to_vmem [thread:$0]  %s0, 128, %s20, [#allocation3]
    $region5: #{tpu_custom_call.1} parent=1 // pred_fallthru
      _
    // Predicated region
    $region6: #{tpu_custom_call.1} parent=1 // pred_check
      _
    $region7: #{tpu_custom_call.1} parent=1 // pred_check_branch
      %24 = sbr.rel (0) target = $region9
    $region8: #{tpu_custom_call.1} parent=1 // pred_region
      %s26 = ssub.s32 128, 128
      %27 = vsyncadd [#allocation6], %s26
      %s29 = sshll.u32 [#allocation5], 4
      %s30 = int_to_ptr.vmem [resolvable:$true] %s29
      %32 = dma.hbm_to_vmem [thread:$0]  %s1, 128, %s30, [#allocation6]
    $region9: #{tpu_custom_call.1} parent=1 // pred_fallthru
      _
    // Predicated region
    $region10: #{tpu_custom_call.1} parent=1 // pred_check
      _
    $region11: #{tpu_custom_call.1} parent=1 // pred_check_branch
      %34 = sbr.rel (0) target = $region13
    $region12: #{tpu_custom_call.1} parent=1 // pred_region
      %s36 = ssub.s32 128, 128
      %37 = vsyncadd [#allocation6], %s36
      %s39 = sshll.u32 [#allocation7], 4
      %s40 = int_to_ptr.vmem [resolvable:$true] %s39
      %42 = dma.hbm_to_vmem [thread:$0]  %s2, 128, %s40, [#allocation6]
    $region13: #{tpu_custom_call.1} parent=1 // pred_fallthru
      _
    // Predicated region
    $region14: #{tpu_custom_call.1} parent=1 // pred_check
      _
    $region15: #{tpu_custom_call.1} parent=1 // pred_check_branch
      %44 = sbr.rel (0) target = $region17
    $region16: #{tpu_custom_call.1} parent=1 // pred_region
      %s46 = ssub.s32 128, 128
      %47 = vsyncadd [#allocation9], %s46
      %s49 = sshll.u32 [#allocation8], 4
      %s50 = int_to_ptr.vmem [resolvable:$true] %s49
      %52 = dma.hbm_to_vmem [thread:$0]  %s3, 128, %s50, [#allocation9]
    $region17: #{tpu_custom_call.1} parent=1 // pred_fallthru
      _
    // Predicated region
    $region18: #{tpu_custom_call.1} parent=1 // pred_check
      _
    $region19: #{tpu_custom_call.1} parent=1 // pred_check_branch
      %54 = sbr.rel (0) target = $region21
    $region20: #{tpu_custom_call.1} parent=1 // pred_region
      %55 = dma.done [#allocation3], 128
    $region21: #{tpu_custom_call.1} parent=1 // pred_fallthru
      _
    // Predicated region
    $region22: #{tpu_custom_call.1} parent=1 // pred_check
      _
    $region23: #{tpu_custom_call.1} parent=1 // pred_check_branch
      %57 = sbr.rel (0) target = $region25
    $region24: #{tpu_custom_call.1} parent=1 // pred_region
      %58 = dma.done [#allocation6], 128
    $region25: #{tpu_custom_call.1} parent=1 // pred_fallthru
      _
    // Predicated region
    $region26: #{tpu_custom_call.1} parent=1 // pred_check
      _
    $region27: #{tpu_custom_call.1} parent=1 // pred_check_branch
      %60 = sbr.rel (0) target = $region29
    $region28: #{tpu_custom_call.1} parent=1 // pred_region
      %61 = dma.done [#allocation6], 128
    $region29: #{tpu_custom_call.1} parent=1 // pred_fallthru
      _
    // Predicated region
    $region30: #{tpu_custom_call.1} parent=1 // pred_check
      _
    $region31: #{tpu_custom_call.1} parent=1 // pred_check_branch
      %63 = sbr.rel (0) target = $region33
    $region32: #{tpu_custom_call.1} parent=1 // pred_region
      %64 = dma.done [#allocation9], 128
    $region33: #{tpu_custom_call.1} parent=1 // pred_fallthru
      _
    %v65 = vld [vmem:[#allocation2] sm:$0xff]
    %v66 = vld [vmem:[#allocation5] sm:$0xff]
    %v67 = vld [vmem:[#allocation7] sm:$0xff]
    %v68 = vld [vmem:[#allocation8] sm:$0xff]
    %v69 = vadd.f32 %v65, %v66
    %v70 = vadd.f32 %v69, %v67
    %v71 = vadd.f32 %v70, %v68
    %v72 = vmul.f32 %v71, 0.25
    %74 = vrot.lane.b32.xlu0 %v72, 32
    %v75 = vpop.permute.xlu0 %74
    %77 = vrot.lane.b32.xlu0 %v72, 64
    %v78 = vpop.permute.xlu0 %77
    %80 = vrot.lane.b32.xlu0 %v72, 96
    %v81 = vpop.permute.xlu0 %80
    %vm83 = vcmask 261120
    %v84 = vsel %vm83, %v72, %v75
    %vm85 = vcmask 523264
    %v86 = vsel %vm85, %v84, %v78
    %vm87 = vcmask 785408
    %v88 = vsel %vm87, %v86, %v81
    %v89 = vrot.slane %v72, 1
    %90 = vrot.lane.b32.xlu0 %v89, 32
    %v91 = vpop.permute.xlu0 %90
    %v93 = vrot.slane %v72, 2
    %94 = vrot.lane.b32.xlu0 %v93, 64
    %v95 = vpop.permute.xlu0 %94
    %v97 = vrot.slane %v72, 3
    %98 = vrot.lane.b32.xlu0 %v97, 96
    %v99 = vpop.permute.xlu0 %98
    %v101 = vrot.slane %v72, 4
    %v103 = vrot.slane %v72, 5
    %104 = vrot.lane.b32.xlu0 %v103, 32
    %v105 = vpop.permute.xlu0 %104
    %v107 = vrot.slane %v72, 6
    %108 = vrot.lane.b32.xlu0 %v107, 64
    %v109 = vpop.permute.xlu0 %108
    %v111 = vrot.slane %v72, 7
    %112 = vrot.lane.b32.xlu0 %v111, 96
    %v113 = vpop.permute.xlu0 %112
    %v115 = vsel %vm83, %v72, %v91
    %v116 = vsel %vm85, %v115, %v95
    %v117 = vsel %vm87, %v116, %v99
    %v118 = vsel %vm83, %v101, %v105
    %v119 = vsel %vm85, %v118, %v109
    %v120 = vsel %vm87, %v119, %v113
    %v121 = vlaneseq
    %v122 = vshrl.u32 %v121, 7
    %v123 = vsub.s32 0, %v122
    %v124 = vrot.slane %v117, %v123
    %v125 = vlaneseq
    %v126 = vshrl.u32 %v125, 7
    %v127 = vsub.s32 0, %v126
    %v128 = vrot.slane %v120, %v127
    %v129 = vsub.f32 %v88, %v124
    %v130 = vsub.f32 %v88, %v128
    %v131 = vand.u32 2147483647, %v129
    %v132 = vand.u32 2147483647, %v130
    %v133 = vlaneseq
    %v134 = vshrl.u32 %v133, 7
    %v135 = vadd.s32 %v134, 8
    %v136 = vadd.s32 %v134, 16
    %v137 = vadd.s32 %v134, 24
    %v138 = vadd.s32 %v134, 32
    %v139 = vadd.s32 %v134, 40
    %v140 = vadd.s32 %v134, 48
    %v141 = vadd.s32 %v134, 56
    %v142 = vadd.s32 %v134, 64
    %v143 = vadd.s32 %v134, 72
    %v144 = vadd.s32 %v134, 80
    %v145 = vadd.s32 %v134, 88
    %v146 = vadd.s32 %v134, 96
    %v147 = vadd.s32 %v134, 104
    %v148 = vadd.s32 %v134, 112
    %v149 = vadd.s32 %v134, 120
    %v150 = vadd.s32 %v134, 128
    %v151 = vadd.s32 %v134, 136
    %v152 = vadd.s32 %v134, 144
    %v153 = vadd.s32 %v134, 152
    %v154 = vadd.s32 %v134, 160
    %v155 = vadd.s32 %v134, 168
    %v156 = vadd.s32 %v134, 176
    %v157 = vadd.s32 %v134, 184
    %v158 = vadd.s32 %v134, 192
    %v159 = vadd.s32 %v134, 200
    %v160 = vadd.s32 %v134, 208
    %v161 = vadd.s32 %v134, 216
    %v162 = vadd.s32 %v134, 224
    %v163 = vadd.s32 %v134, 232
    %v164 = vadd.s32 %v134, 240
    %v165 = vadd.s32 %v134, 248
    %v166 = vlaneseq
    %v167 = vand.u32 %v166, 127
    %v168 = vmul.u32 %v167, 32
    %vm169 = vcmp.ge.s32.totalorder %v134, %v168
    %vm170 = vcmp.ge.s32.totalorder %v135, %v168
    %vm171 = vcmp.ge.s32.totalorder %v136, %v168
    %vm172 = vcmp.ge.s32.totalorder %v137, %v168
    %vm173 = vcmp.ge.s32.totalorder %v138, %v168
    %vm174 = vcmp.ge.s32.totalorder %v139, %v168
    %vm175 = vcmp.ge.s32.totalorder %v140, %v168
    %vm176 = vcmp.ge.s32.totalorder %v141, %v168
    %vm177 = vcmp.ge.s32.totalorder %v142, %v168
    %vm178 = vcmp.ge.s32.totalorder %v143, %v168
    %vm179 = vcmp.ge.s32.totalorder %v144, %v168
    %vm180 = vcmp.ge.s32.totalorder %v145, %v168
    %vm181 = vcmp.ge.s32.totalorder %v146, %v168
    %vm182 = vcmp.ge.s32.totalorder %v147, %v168
    %vm183 = vcmp.ge.s32.totalorder %v148, %v168
    %vm184 = vcmp.ge.s32.totalorder %v149, %v168
    %vm185 = vcmp.ge.s32.totalorder %v150, %v168
    %vm186 = vcmp.ge.s32.totalorder %v151, %v168
    %vm187 = vcmp.ge.s32.totalorder %v152, %v168
    %vm188 = vcmp.ge.s32.totalorder %v153, %v168
    %vm189 = vcmp.ge.s32.totalorder %v154, %v168
    %vm190 = vcmp.ge.s32.totalorder %v155, %v168
    %vm191 = vcmp.ge.s32.totalorder %v156, %v168
    %vm192 = vcmp.ge.s32.totalorder %v157, %v168
    %vm193 = vcmp.ge.s32.totalorder %v158, %v168
    %vm194 = vcmp.ge.s32.totalorder %v159, %v168
    %vm195 = vcmp.ge.s32.totalorder %v160, %v168
    %vm196 = vcmp.ge.s32.totalorder %v161, %v168
    %vm197 = vcmp.ge.s32.totalorder %v162, %v168
    %vm198 = vcmp.ge.s32.totalorder %v163, %v168
    %vm199 = vcmp.ge.s32.totalorder %v164, %v168
    %vm200 = vcmp.ge.s32.totalorder %v165, %v168
    %v201 = vadd.s32 %v167, 1
    %v202 = vmul.u32 %v201, 32
    %vm203 = vcmp.lt.s32.totalorder %v134, %v202
    %vm204 = vcmp.lt.s32.totalorder %v135, %v202
    %vm205 = vcmp.lt.s32.totalorder %v136, %v202
    %vm206 = vcmp.lt.s32.totalorder %v137, %v202
    %vm207 = vcmp.lt.s32.totalorder %v138, %v202
    %vm208 = vcmp.lt.s32.totalorder %v139, %v202
    %vm209 = vcmp.lt.s32.totalorder %v140, %v202
    %vm210 = vcmp.lt.s32.totalorder %v141, %v202
    %vm211 = vcmp.lt.s32.totalorder %v142, %v202
    %vm212 = vcmp.lt.s32.totalorder %v143, %v202
    %vm213 = vcmp.lt.s32.totalorder %v144, %v202
    %vm214 = vcmp.lt.s32.totalorder %v145, %v202
    %vm215 = vcmp.lt.s32.totalorder %v146, %v202
    %vm216 = vcmp.lt.s32.totalorder %v147, %v202
    %vm217 = vcmp.lt.s32.totalorder %v148, %v202
    %vm218 = vcmp.lt.s32.totalorder %v149, %v202
    %vm219 = vcmp.lt.s32.totalorder %v150, %v202
    %vm220 = vcmp.lt.s32.totalorder %v151, %v202
    %vm221 = vcmp.lt.s32.totalorder %v152, %v202
    %vm222 = vcmp.lt.s32.totalorder %v153, %v202
    %vm223 = vcmp.lt.s32.totalorder %v154, %v202
    %vm224 = vcmp.lt.s32.totalorder %v155, %v202
    %vm225 = vcmp.lt.s32.totalorder %v156, %v202
    %vm226 = vcmp.lt.s32.totalorder %v157, %v202
    %vm227 = vcmp.lt.s32.totalorder %v158, %v202
    %vm228 = vcmp.lt.s32.totalorder %v159, %v202
    %vm229 = vcmp.lt.s32.totalorder %v160, %v202
    %vm230 = vcmp.lt.s32.totalorder %v161, %v202
    %vm231 = vcmp.lt.s32.totalorder %v162, %v202
    %vm232 = vcmp.lt.s32.totalorder %v163, %v202
    %vm233 = vcmp.lt.s32.totalorder %v164, %v202
    %vm234 = vcmp.lt.s32.totalorder %v165, %v202
    %vm235 = vmand %vm169, %vm203
    %vm236 = vmand %vm170, %vm204
    %vm237 = vmand %vm171, %vm205
    %vm238 = vmand %vm172, %vm206
    %vm239 = vmand %vm173, %vm207
    %vm240 = vmand %vm174, %vm208
    %vm241 = vmand %vm175, %vm209
    %vm242 = vmand %vm176, %vm210
    %vm243 = vmand %vm177, %vm211
    %vm244 = vmand %vm178, %vm212
    %vm245 = vmand %vm179, %vm213
    %vm246 = vmand %vm180, %vm214
    %vm247 = vmand %vm181, %vm215
    %vm248 = vmand %vm182, %vm216
    %vm249 = vmand %vm183, %vm217
    %vm250 = vmand %vm184, %vm218
    %vm251 = vmand %vm185, %vm219
    %vm252 = vmand %vm186, %vm220
    %vm253 = vmand %vm187, %vm221
    %vm254 = vmand %vm188, %vm222
    %vm255 = vmand %vm189, %vm223
    %vm256 = vmand %vm190, %vm224
    %vm257 = vmand %vm191, %vm225
    %vm258 = vmand %vm192, %vm226
    %vm259 = vmand %vm193, %vm227
    %vm260 = vmand %vm194, %vm228
    %vm261 = vmand %vm195, %vm229
    %vm262 = vmand %vm196, %vm230
    %vm263 = vmand %vm197, %vm231
    %vm264 = vmand %vm198, %vm232
    %vm265 = vmand %vm199, %vm233
    %vm266 = vmand %vm200, %vm234
    %v267 = vsel %vm235, 1, 0
    %v268 = vsel %vm236, 1, 0
    %v269 = vsel %vm237, 1, 0
    %v270 = vsel %vm238, 1, 0
    %v271 = vsel %vm239, 1, 0
    %v272 = vsel %vm240, 1, 0
    %v273 = vsel %vm241, 1, 0
    %v274 = vsel %vm242, 1, 0
    %v275 = vsel %vm243, 1, 0
    %v276 = vsel %vm244, 1, 0
    %v277 = vsel %vm245, 1, 0
    %v278 = vsel %vm246, 1, 0
    %v279 = vsel %vm247, 1, 0
    %v280 = vsel %vm248, 1, 0
    %v281 = vsel %vm249, 1, 0
    %v282 = vsel %vm250, 1, 0
    %v283 = vsel %vm251, 1, 0
    %v284 = vsel %vm252, 1, 0
    %v285 = vsel %vm253, 1, 0
    %v286 = vsel %vm254, 1, 0
    %v287 = vsel %vm255, 1, 0
    %v288 = vsel %vm256, 1, 0
    %v289 = vsel %vm257, 1, 0
    %v290 = vsel %vm258, 1, 0
    %v291 = vsel %vm259, 1, 0
    %v292 = vsel %vm260, 1, 0
    %v293 = vsel %vm261, 1, 0
    %v294 = vsel %vm262, 1, 0
    %v295 = vsel %vm263, 1, 0
    %v296 = vsel %vm264, 1, 0
    %v297 = vsel %vm265, 1, 0
    %v298 = vsel %vm266, 1, 0
    %v299 = vcvt.s32.f32 %v267
    %v300 = vcvt.s32.f32 %v268
    %v301 = vcvt.s32.f32 %v269
    %v302 = vcvt.s32.f32 %v270
    %v303 = vcvt.s32.f32 %v271
    %v304 = vcvt.s32.f32 %v272
    %v305 = vcvt.s32.f32 %v273
    %v306 = vcvt.s32.f32 %v274
    %v307 = vcvt.s32.f32 %v275
    %v308 = vcvt.s32.f32 %v276
    %v309 = vcvt.s32.f32 %v277
    %v310 = vcvt.s32.f32 %v278
    %v311 = vcvt.s32.f32 %v279
    %v312 = vcvt.s32.f32 %v280
    %v313 = vcvt.s32.f32 %v281
    %v314 = vcvt.s32.f32 %v282
    %v315 = vcvt.s32.f32 %v283
    %v316 = vcvt.s32.f32 %v284
    %v317 = vcvt.s32.f32 %v285
    %v318 = vcvt.s32.f32 %v286
    %v319 = vcvt.s32.f32 %v287
    %v320 = vcvt.s32.f32 %v288
    %v321 = vcvt.s32.f32 %v289
    %v322 = vcvt.s32.f32 %v290
    %v323 = vcvt.s32.f32 %v291
    %v324 = vcvt.s32.f32 %v292
    %v325 = vcvt.s32.f32 %v293
    %v326 = vcvt.s32.f32 %v294
    %v327 = vcvt.s32.f32 %v295
    %v328 = vcvt.s32.f32 %v296
    %v329 = vcvt.s32.f32 %v297
    %v330 = vcvt.s32.f32 %v298
    %331 = vmatprep.subr.mxu0 0.0
    %332 = vmatpush1.msra.mxu0 %v314
    %333 = vmatprep.subr.mxu0 0.0
    %334 = vmatpush1.msra.mxu0 %v313
    %335 = vmatprep.subr.mxu0 0.0
    %336 = vmatpush1.msra.mxu0 %v312
    %337 = vmatprep.subr.mxu0 0.0
    %338 = vmatpush1.msra.mxu0 %v311
    %339 = vmatprep.subr.mxu0 0.0
    %340 = vmatpush1.msra.mxu0 %v310
    %341 = vmatprep.subr.mxu0 0.0
    %342 = vmatpush1.msra.mxu0 %v309
    %343 = vmatprep.subr.mxu0 0.0
    %344 = vmatpush1.msra.mxu0 %v308
    %345 = vmatprep.subr.mxu0 0.0
    %346 = vmatpush1.msra.mxu0 %v307
    %347 = vmatprep.subr.mxu0 0.0
    %348 = vmatpush1.msra.mxu0 %v306
    %349 = vmatprep.subr.mxu0 0.0
    %350 = vmatpush1.msra.mxu0 %v305
    %351 = vmatprep.subr.mxu0 0.0
    %352 = vmatpush1.msra.mxu0 %v304
    %353 = vmatprep.subr.mxu0 0.0
    %354 = vmatpush1.msra.mxu0 %v303
    %355 = vmatprep.subr.mxu0 0.0
    %356 = vmatpush1.msra.mxu0 %v302
    %357 = vmatprep.subr.mxu0 0.0
    %358 = vmatpush1.msra.mxu0 %v301
    %359 = vmatprep.subr.mxu0 0.0
    %360 = vmatpush1.msra.mxu0 %v300
    %361 = vmatprep.subr.mxu0 0.0
    %362 = vmatpush1.msra.mxu0 %v299
    %363 = vmatprep.subr.mxu0 0.0
    %364 = vmatpush2.msra.mxu0 %v330
    %365 = vmatprep.subr.mxu0 0.0
    %366 = vmatpush2.msra.mxu0 %v329
    %367 = vmatprep.subr.mxu0 0.0
    %368 = vmatpush2.msra.mxu0 %v328
    %369 = vmatprep.subr.mxu0 0.0
    %370 = vmatpush2.msra.mxu0 %v327
    %371 = vmatprep.subr.mxu0 0.0
    %372 = vmatpush2.msra.mxu0 %v326
    %373 = vmatprep.subr.mxu0 0.0
    %374 = vmatpush2.msra.mxu0 %v325
    %375 = vmatprep.subr.mxu0 0.0
    %376 = vmatpush2.msra.mxu0 %v324
    %377 = vmatprep.subr.mxu0 0.0
    %378 = vmatpush2.msra.mxu0 %v323
    %379 = vmatprep.subr.mxu0 0.0
    %380 = vmatpush2.msra.mxu0 %v322
    %381 = vmatprep.subr.mxu0 0.0
    %382 = vmatpush2.msra.mxu0 %v321
    %383 = vmatprep.subr.mxu0 0.0
    %384 = vmatpush2.msra.mxu0 %v320
    %385 = vmatprep.subr.mxu0 0.0
    %386 = vmatpush2.msra.mxu0 %v319
    %387 = vmatprep.subr.mxu0 0.0
    %388 = vmatpush2.msra.mxu0 %v318
    %389 = vmatprep.subr.mxu0 0.0
    %390 = vmatpush2.msra.mxu0 %v317
    %391 = vmatprep.subr.mxu0 0.0
    %392 = vmatpush2.msra.mxu0 %v316
    %393 = vmatprep.subr.mxu0 0.0
    %394 = vmatpush2.msra.mxu0 %v315
    %395 = vmatprep.mubr.f32.mxu0 %v132
    %396 = vmatmul.mubr.f32.gmra.mxu0 %v131
    %v397 = vpop.f32.mrf.mxu0
    %v398 = vadd.f32 0.0, %v397
    %v399 = vpop.f32.mrf.mxu0
    %400 = vdwg.mxu0
    %vm401 = vcmp.eq.s32.totalorder %v134, %v167
    %v402 = vsel %vm401, 1, 0
    %v403 = vcvt.s32.f32 %v402
    %vm404 = vcmask 64512
    %v405 = vsel %vm404, %v398, -inf
    %v406 = vrot.slane %v405, 4
    %v407 = vmax.f32 %v405, %v406
    %v408 = vrot.slane %v407, 2
    %v409 = vmax.f32 %v407, %v408
    %v410 = vrot.slane %v409, 1
    %v411 = vmax.f32 %v409, %v410
    %vm412 = vcmp.eq.f32.partialorder %v398, %v411
    %v413 = vsel %vm412, %v134, 8
    %v414 = vsel %vm404, %v413, 2147483647
    %v415 = vrot.slane %v414, 4
    %vm416 = vcmp.lt.s32.totalorder %v414, %v415
    %v417 = vsel %vm416, %v414, %v415
    %v418 = vrot.slane %v417, 2
    %vm419 = vcmp.lt.s32.totalorder %v417, %v418
    %v420 = vsel %vm419, %v417, %v418
    %v421 = vrot.slane %v420, 1
    %vm422 = vcmp.lt.s32.totalorder %v420, %v421
    %v423 = vsel %vm422, %v420, %v421
    %vm424 = vcmp.eq.s32.totalorder %v134, %v423
    %vm425 = vmor %vm401, %vm424
    %v426 = vsel %vm424, -inf, %v398
    %v427 = vsel %vm404, %v426, -inf
    %v428 = vrot.slane %v427, 4
    %v429 = vmax.f32 %v427, %v428
    %v430 = vrot.slane %v429, 2
    %v431 = vmax.f32 %v429, %v430
    %v432 = vrot.slane %v431, 1
    %v433 = vmax.f32 %v431, %v432
    %vm434 = vcmp.eq.f32.partialorder %v426, %v433
    %v435 = vsel %vm434, %v134, 8
    %v436 = vsel %vm404, %v435, 2147483647
    %v437 = vrot.slane %v436, 4
    %vm438 = vcmp.lt.s32.totalorder %v436, %v437
    %v439 = vsel %vm438, %v436, %v437
    %v440 = vrot.slane %v439, 2
    %vm441 = vcmp.lt.s32.totalorder %v439, %v440
    %v442 = vsel %vm441, %v439, %v440
    %v443 = vrot.slane %v442, 1
    %vm444 = vcmp.lt.s32.totalorder %v442, %v443
    %v445 = vsel %vm444, %v442, %v443
    %vm446 = vcmp.eq.s32.totalorder %v134, %v445
    %vm447 = vmor %vm425, %vm446
    %v448 = vsel %vm446, -inf, %v426
    %v449 = vsel %vm404, %v448, -inf
    %v450 = vrot.slane %v449, 4
    %v451 = vmax.f32 %v449, %v450
    %v452 = vrot.slane %v451, 2
    %v453 = vmax.f32 %v451, %v452
    %v454 = vrot.slane %v453, 1
    %v455 = vmax.f32 %v453, %v454
    %vm456 = vcmp.eq.f32.partialorder %v448, %v455
    %v457 = vsel %vm456, %v134, 8
    %v458 = vsel %vm404, %v457, 2147483647
    %v459 = vrot.slane %v458, 4
    %vm460 = vcmp.lt.s32.totalorder %v458, %v459
    %v461 = vsel %vm460, %v458, %v459
    %v462 = vrot.slane %v461, 2
    %vm463 = vcmp.lt.s32.totalorder %v461, %v462
    %v464 = vsel %vm463, %v461, %v462
    %v465 = vrot.slane %v464, 1
    %vm466 = vcmp.lt.s32.totalorder %v464, %v465
    %v467 = vsel %vm466, %v464, %v465
    %vm468 = vcmp.eq.s32.totalorder %v134, %v467
    %vm469 = vmor %vm447, %vm468
    %v470 = vsel %vm469, 1, 0
    %v471 = vcvt.s32.f32 %v470
    %v472 = vsel %vm404, %v471, 0.0
    %v473 = vrot.slane %v472, 4
    %v474 = vadd.f32 %v472, %v473
    %v475 = vrot.slane %v474, 2
    %v476 = vadd.f32 %v474, %v475
    %v477 = vrot.slane %v476, 1
    %v478 = vadd.f32 %v476, %v477
    %v479 = vmul.f32 %v478, 4.0
    %480 = vadd.xlane.f32.xlu0 %v472
    %v481 = vpop.xlane.xlu0 %480
    %v482 = vadd.f32 %v481, 1.0
    %v483 = vrcp.pop %v479
    %v484 = vmul.f32 %v471, %v483
    %v486 = vsel %vm404, %v484, 0
    %v489 = vsel %vm404, %v471, 0
    %491 = vmatprep.subr.mxu0 0.0
    %492 = vmatpush1.xpose.msra.mxu0 0.0
    %493 = vmatprep.subr.mxu0 0.0
    %494 = vmatpush1.xpose.msra.mxu0 0.0
    %495 = vmatprep.subr.mxu0 0.0
    %496 = vmatpush1.xpose.msra.mxu0 0.0
    %497 = vmatprep.subr.mxu0 0.0
    %498 = vmatpush1.xpose.msra.mxu0 0.0
    %499 = vmatprep.subr.mxu0 0.0
    %500 = vmatpush1.xpose.msra.mxu0 0.0
    %501 = vmatprep.subr.mxu0 0.0
    %502 = vmatpush1.xpose.msra.mxu0 0.0
    %503 = vmatprep.subr.mxu0 0.0
    %504 = vmatpush1.xpose.msra.mxu0 0.0
    %505 = vmatprep.subr.mxu0 0.0
    %506 = vmatpush1.xpose.msra.mxu0 0.0
    %507 = vmatprep.subr.mxu0 0.0
    %508 = vmatpush1.xpose.msra.mxu0 0.0
    %509 = vmatprep.subr.mxu0 0.0
    %510 = vmatpush1.xpose.msra.mxu0 0.0
    %511 = vmatprep.subr.mxu0 0.0
    %512 = vmatpush1.xpose.msra.mxu0 0.0
    %513 = vmatprep.subr.mxu0 0.0
    %514 = vmatpush1.xpose.msra.mxu0 0.0
    %515 = vmatprep.subr.mxu0 0.0
    %516 = vmatpush1.xpose.msra.mxu0 0.0
    %517 = vmatprep.subr.mxu0 0.0
    %518 = vmatpush1.xpose.msra.mxu0 0.0
    %519 = vmatprep.subr.mxu0 0.0
    %520 = vmatpush1.xpose.msra.mxu0 0.0
    %521 = vmatprep.subr.mxu0 0.0
    %522 = vmatpush1.xpose.msra.mxu0 %v489
    %523 = vmatprep.subr.mxu0 0.0
    %524 = vmatpush2.xpose.msra.mxu0 0.0
    %525 = vmatprep.subr.mxu0 0.0
    %526 = vmatpush2.xpose.msra.mxu0 0.0
    %527 = vmatprep.subr.mxu0 0.0
    %528 = vmatpush2.xpose.msra.mxu0 0.0
    %529 = vmatprep.subr.mxu0 0.0
    %530 = vmatpush2.xpose.msra.mxu0 0.0
    %531 = vmatprep.subr.mxu0 0.0
    %532 = vmatpush2.xpose.msra.mxu0 0.0
    %533 = vmatprep.subr.mxu0 0.0
    %534 = vmatpush2.xpose.msra.mxu0 0.0
    %535 = vmatprep.subr.mxu0 0.0
    %536 = vmatpush2.xpose.msra.mxu0 0.0
    %537 = vmatprep.subr.mxu0 0.0
    %538 = vmatpush2.xpose.msra.mxu0 0.0
    %539 = vmatprep.subr.mxu0 0.0
    %540 = vmatpush2.xpose.msra.mxu0 0.0
    %541 = vmatprep.subr.mxu0 0.0
    %542 = vmatpush2.xpose.msra.mxu0 0.0
    %543 = vmatprep.subr.mxu0 0.0
    %544 = vmatpush2.xpose.msra.mxu0 0.0
    %545 = vmatprep.subr.mxu0 0.0
    %546 = vmatpush2.xpose.msra.mxu0 0.0
    %547 = vmatprep.subr.mxu0 0.0
    %548 = vmatpush2.xpose.msra.mxu0 0.0
    %549 = vmatprep.subr.mxu0 0.0
    %550 = vmatpush2.xpose.msra.mxu0 0.0
    %551 = vmatprep.subr.mxu0 0.0
    %552 = vmatpush2.xpose.msra.mxu0 0.0
    %553 = vmatprep.subr.mxu0 0.0
    %554 = vmatpush2.xpose.msra.mxu0 0.0
    %555 = vmatprep.mubr.f32.mxu0 0.0
    %556 = vmatmul.mubr.f32.gmra.mxu0 %v486
    %v557 = vpop.f32.mrf.mxu0
    %v558 = vadd.f32 0.0, %v557
    %v559 = vpop.f32.mrf.mxu0
    %560 = vdwg.mxu0
    %v561 = vmul.f32 %v403, 0.25
    %v562 = vadd.f32 %v561, %v558
    %v563 = vrcp.pop %v482
    %v564 = vmul.f32 %v562, %v563
    %566 = vrot.lane.b32.xlu0 %v564, 8
    %v567 = vpop.permute.xlu0 %566
    %569 = vrot.lane.b32.xlu0 %v564, 16
    %v570 = vpop.permute.xlu0 %569
    %572 = vrot.lane.b32.xlu0 %v564, 24
    %v573 = vpop.permute.xlu0 %572
    %575 = vrot.lane.b32.xlu0 %v564, 32
    %v576 = vpop.permute.xlu0 %575
    %578 = vrot.lane.b32.xlu0 %v564, 40
    %v579 = vpop.permute.xlu0 %578
    %581 = vrot.lane.b32.xlu0 %v564, 48
    %v582 = vpop.permute.xlu0 %581
    %584 = vrot.lane.b32.xlu0 %v564, 56
    %v585 = vpop.permute.xlu0 %584
    %587 = vrot.lane.b32.xlu0 %v564, 64
    %v588 = vpop.permute.xlu0 %587
    %590 = vrot.lane.b32.xlu0 %v564, 72
    %v591 = vpop.permute.xlu0 %590
    %593 = vrot.lane.b32.xlu0 %v564, 80
    %v594 = vpop.permute.xlu0 %593
    %596 = vrot.lane.b32.xlu0 %v564, 88
    %v597 = vpop.permute.xlu0 %596
    %599 = vrot.lane.b32.xlu0 %v564, 96
    %v600 = vpop.permute.xlu0 %599
    %602 = vrot.lane.b32.xlu0 %v564, 104
    %v603 = vpop.permute.xlu0 %602
    %605 = vrot.lane.b32.xlu0 %v564, 112
    %v606 = vpop.permute.xlu0 %605
    %608 = vrot.lane.b32.xlu0 %v564, 120
    %v609 = vpop.permute.xlu0 %608
    %v611 = vsel %vm404, %v564, %v567
    %vm612 = vcmask 130048
    %v613 = vsel %vm612, %v611, %v570
    %vm614 = vcmask 195584
    %v615 = vsel %vm614, %v613, %v573
    %v616 = vsel %vm83, %v615, %v576
    %vm617 = vcmask 326656
    %v618 = vsel %vm617, %v616, %v579
    %vm619 = vcmask 392192
    %v620 = vsel %vm619, %v618, %v582
    %vm621 = vcmask 457728
    %v622 = vsel %vm621, %v620, %v585
    %v623 = vsel %vm85, %v622, %v588
    %vm624 = vcmask 588800
    %v625 = vsel %vm624, %v623, %v591
    %vm626 = vcmask 654336
    %v627 = vsel %vm626, %v625, %v594
    %vm628 = vcmask 719872
    %v629 = vsel %vm628, %v627, %v597
    %v630 = vsel %vm87, %v629, %v600
    %vm631 = vcmask 850944
    %v632 = vsel %vm631, %v630, %v603
    %vm633 = vcmask 916480
    %v634 = vsel %vm633, %v632, %v606
    %vm635 = vcmask 982016
    %v636 = vsel %vm635, %v634, %v609
    %637 = vst [vmem:[#allocation10] sm:$0xff] %v636
    %638 = vst [vmem:[#allocation10 + $0x8] sm:$0xff] %v636
    %639 = vst [vmem:[#allocation10 + $0x10] sm:$0xff] %v636
    %640 = vst [vmem:[#allocation10 + $0x18] sm:$0xff] %v636
    // Predicated region
    $region34: #{tpu_custom_call.1} parent=1 // pred_check
      _
    $region35: #{tpu_custom_call.1} parent=1 // pred_check_branch
      %642 = sbr.rel (0) target = $region37
    $region36: #{tpu_custom_call.1} parent=1 // pred_region
      %s644 = ssub.s32 512, 512
      %645 = vsyncadd [#allocation4], %s644
      %s646 = sshll.u32 [#allocation10], 4
      %s647 = int_to_ptr.vmem [resolvable:$true] %s646
      %652 = dma.vmem_to_hbm [thread:$0]  %s647, 512, %s4, [#allocation4], 128, 128, 8
    $region37: #{tpu_custom_call.1} parent=1 // pred_fallthru
      _
    // Predicated region
    $region38: #{tpu_custom_call.1} parent=1 // pred_check
      _
    $region39: #{tpu_custom_call.1} parent=1 // pred_check_branch
      %654 = sbr.rel (0) target = $region41
    $region40: #{tpu_custom_call.1} parent=1 // pred_region
      %655 = dma.done [#allocation4], 512
    $region41: #{tpu_custom_call.1} parent=1 // pred_fallthru
      _
    %656 = vsyncpa [#allocation3], 1
    %657 = vsyncpa [#allocation6], 1
    %658 = vsyncpa [#allocation9], 1
    %659 = vsyncpa [#allocation4], 1

</llo_original>
